<compile_context>
chip_gen: v6e
topology: v6e:2x2x1
jax: 0.10.0
libtpu: 0.0.40
codegen_flags: <defaults>
</compile_context>

<pallas_src>
import jax
import jax.numpy as jnp
from jax import lax
from jax.experimental import pallas as pl
from jax.experimental.pallas import tpu as pltpu

LN_EPS = 1e-5


def mlp_kernel(x_ref, w0_ref, b0_ref, wh_ref, bh_ref, g_ref, be_ref,
               wf_ref, bf_ref, o_ref):
    """One batch tile. Activations are (features, tb): batch on the lane axis."""
    # layers[0] = Linear(d_in, H); layers[1] = Tanh().
    # x_ref is the native (tb, d_in) tile; contract d_in on both operands so
    # the MXU directly produces (H, tb) — no separate transpose pass in XLA.
    z0 = lax.dot_general(w0_ref[...], x_ref[...],
                         dimension_numbers=(((1,), (1,)), ((), ())),
                         preferred_element_type=jnp.float32)
    h = jnp.tanh(z0 + b0_ref[...])                            # (H, tb)

    # Hidden blocks: Linear -> LayerNorm -> Tanh -> Dropout(identity, eval).
    # The module's pre-block doubling (layer index i = 2 + j even) is already
    # folded into wh[j] by pack_params_for_kernel().
    n_blocks = wh_ref.shape[0]
    for j in range(n_blocks):
        z = jnp.dot(wh_ref[j], h, preferred_element_type=jnp.float32) + bh_ref[j]
        # LayerNorm over the feature axis (axis 0), biased variance, eps=1e-5.
        mean = jnp.mean(z, axis=0, keepdims=True)
        var = jnp.mean(jnp.square(z - mean), axis=0, keepdims=True)
        z = (z - mean) * lax.rsqrt(var + LN_EPS) * g_ref[j] + be_ref[j]
        h = jnp.tanh(z)

    # final = Linear(H, d_out) -> (d_out, tb); lane-dense store.
    o_ref[...] = (
        jnp.dot(wf_ref[...], h, preferred_element_type=jnp.float32) + bf_ref[...]
    ).astype(o_ref.dtype)


def init_params(key, d_in, d_out, num_hidden_layers, n_neurons):
    """PyTorch-layout params: Linear weights (out, in), zero biases, LN affine."""
    n_blocks = num_hidden_layers - 1
    keys = jax.random.split(key, 2 + n_blocks)

    def xavier(k, fan_out, fan_in):
        bound = (6.0 / (fan_in + fan_out)) ** 0.5
        return jax.random.uniform(k, (fan_out, fan_in), jnp.float32, -bound, bound)

    w0 = xavier(keys[0], n_neurons, d_in)
    b0 = jnp.zeros((n_neurons,), jnp.float32)
    wh = jnp.stack([xavier(keys[2 + j], n_neurons, n_neurons)
                    for j in range(n_blocks)])
    bh = jnp.zeros((n_blocks, n_neurons), jnp.float32)
    gamma = jnp.ones((n_blocks, n_neurons), jnp.float32)
    beta = jnp.zeros((n_blocks, n_neurons), jnp.float32)
    wf = xavier(keys[1], d_out, n_neurons)
    bf = jnp.zeros((d_out,), jnp.float32)
    return w0, b0, wh, bh, gamma, beta, wf, bf


def pack_params_for_kernel(params):
    """One-time transform of PyTorch-layout params into kernel layout.

    - weights stay (out, in): kernel computes W @ h with batch on lanes;
    - biases / LN gamma, beta get a trailing length-1 lane axis;
    - the pre-block doubling (module layer index i = 2 + j even; residual is
      reassigned to x after every layer, so residual == x at the add site and
      the add is exactly 2h) is folded into that block's weight.
    """
    w0, b0, wh, bh, gamma, beta, wf, bf = params
    n_blocks = wh.shape[0]
    scale = jnp.asarray(
        [2.0 if (2 + j) % 2 == 0 else 1.0 for j in range(n_blocks)],
        jnp.float32).reshape(n_blocks, 1, 1)
    return (w0, b0[:, None], wh * scale, bh[..., None],
            gamma[..., None], beta[..., None], wf, bf[:, None])


def _round_up(x, m):
    return (x + m - 1) // m * m


def _tensorcores_per_chip():
    """Only v7x (and v4 megacore) expose 2 TensorCores worth of 'parallel'
    sharding per device; v5e/v6e are single-TC so extra grid steps are pure
    overhead for small batches."""
    try:
        kind = jax.devices()[0].device_kind.lower()
    except Exception:
        return 1
    return 2 if ("v7" in kind or "v4" in kind) else 1


def _choose_tile(B, max_tb=8192, num_cores=1, max_pad_frac=0.125):
    """Pick (tb, steps): tb a lane-dense multiple of 128, tb <= max_tb.

    steps is kept minimal (per-step pipeline overhead ~0.35 us) unless batch
    padding exceeds max_pad_frac, in which case extra steps are tried only if
    they shrink total padding. On multi-TC chips steps is a multiple of
    num_cores so the 'parallel' batch axis shards evenly across cores.
    """
    assert max_tb % 128 == 0
    B = max(int(B), 1)
    c = max(int(num_cores), 1)
    steps = c * max(1, -(-B // (c * max_tb)))
    tb = _round_up(-(-B // steps), 128)
    best = (tb, steps, steps * tb)
    while best[0] > 128 and (best[2] - B) / best[2] > max_pad_frac:
        steps += c
        tb = _round_up(-(-B // steps), 128)
        bp = steps * tb
        if bp < best[2]:
            best = (tb, steps, bp)
        if tb == 128:
            break
    return best[0], best[1]


def mlp_forward(x, kernel_params, tb=None, max_tb=8192,
                batch_major_output=True, num_cores=None):
    """Fused MLP forward.

    Returns (B, d_out) when batch_major_output=True (module-compatible).
    Consumers that can take (d_out, B) should pass False to skip the final
    transpose; the kernel's lane-dense (d_out, tb) store is kept either way.
    """
    w0, b0, wh, bh, gamma, beta, wf, bf = kernel_params
    B, d_in = x.shape
    H = w0.shape[0]
    d_out = wf.shape[0]
    n_blocks = wh.shape[0]

    if num_cores is None:
        num_cores = _tensorcores_per_chip()
    if tb is None:
        tb, steps = _choose_tile(B, max_tb=max_tb, num_cores=num_cores)
    else:
        assert tb % 128 == 0
        steps = max(1, -(-B // tb))
        if num_cores > 1:
            steps = _round_up(steps, num_cores)
    Bp = steps * tb

    # x stays batch-major (B, d_in) in HBM — no host-side transpose. Pad only
    # when the batch is ragged w.r.t. the tile grid (padded columns are
    # column-independent and sliced off below; LN on them stays finite).
    if Bp != B:
        x = jnp.pad(x, ((0, Bp - B), (0, 0)))

    def full_spec(a):
        nd = a.ndim
        return pl.BlockSpec(a.shape, lambda i, _nd=nd: (0,) * _nd)

    flops = 2 * Bp * (d_in * H + n_blocks * H * H + H * d_out)
    transcendentals = Bp * (H * (1 + n_blocks) + n_blocks)   # tanh + rsqrt
    param_bytes = sum(int(p.size) * p.dtype.itemsize for p in kernel_params)
    bytes_accessed = 4 * Bp * (d_in + d_out) + param_bytes

    out_t = pl.pallas_call(
        mlp_kernel,
        out_shape=jax.ShapeDtypeStruct((d_out, Bp), x.dtype),
        grid=(steps,),
        in_specs=[
            pl.BlockSpec((tb, d_in), lambda i: (i, 0)),       # native-layout tile
            full_spec(w0), full_spec(b0),
            full_spec(wh), full_spec(bh),
            full_spec(gamma), full_spec(beta),
            full_spec(wf), full_spec(bf),
        ],
        out_specs=pl.BlockSpec((d_out, tb), lambda i: (0, i)),  # lane-dense store
        compiler_params=pltpu.CompilerParams(
            dimension_semantics=("parallel",),
            # Covers v5e's 16 MiB default at tb=8192 (input tile lane-pads to
            # ~4 MiB/buffer); no-op on v6e/v7x whose default is already 32 MiB.
            vmem_limit_bytes=32 * 1024 * 1024,
        ),
        cost_estimate=pl.CostEstimate(flops=flops,
                                      transcendentals=transcendentals,
                                      bytes_accessed=bytes_accessed),
    )(x, w0, b0, wh, bh, gamma, beta, wf, bf)

    out_lane_major = out_t[:, :B] if Bp != B else out_t      # (d_out, B)
    if batch_major_output:
        return out_lane_major.T                               # (B, d_out)
    return out_lane_major


def mlp_reference(x, params):
    """Pure-JAX reference mirroring the PyTorch forward (eval mode),
    operating on the original (untransformed) PyTorch-layout parameters."""
    w0, b0, wh, bh, gamma, beta, wf, bf = params
    h = jnp.tanh(x @ w0.T + b0)
    for j in range(wh.shape[0]):
        if (2 + j) % 2 == 0:           # module layer index i = 2 + j
            h = h + h                  # x = x + residual (residual == x)
        z = h @ wh[j].T + bh[j]
        mean = z.mean(-1, keepdims=True)
        var = ((z - mean) ** 2).mean(-1, keepdims=True)
        z = (z - mean) / jnp.sqrt(var + LN_EPS) * gamma[j] + beta[j]
        h = jnp.tanh(z)
    return h @ wf.T + bf


if __name__ == "__main__":
    # Module config (small, consistent with the Lorenz MLP):
    input_dim, output_dim = 4, 3
    num_hidden_layers, num_neurons = 3, 32

    key = jax.random.PRNGKey(0)
    pkey, xkey1, xkey2 = jax.random.split(key, 3)
    params = init_params(pkey, input_dim, output_dim, num_hidden_layers, num_neurons)
    kparams = pack_params_for_kernel(params)          # one-time param transform

    x1 = jax.random.normal(xkey1, (256, input_dim), dtype=jnp.float32)
    # Ragged batch exercising the zero-padding path (single 128-wide tile on
    # single-TC chips).
    x2 = jax.random.normal(xkey2, (37, input_dim), dtype=jnp.float32)

    for x in (x1, x2):
        out = jax.block_until_ready(mlp_forward(x, kparams))
        ref = mlp_reference(x, params)
        assert out.shape == (x.shape[0], output_dim)
        assert jnp.allclose(out, ref, atol=5e-5, rtol=5e-5), "mismatch vs reference"

    # Lane-major output path (skips the final transpose entirely).
    out_lm = jax.block_until_ready(
        mlp_forward(x1, kparams, batch_major_output=False))
    assert out_lm.shape == (output_dim, x1.shape[0])
    assert jnp.allclose(out_lm.T, mlp_reference(x1, params), atol=5e-5, rtol=5e-5)

    print("KERNEL_OK")
</pallas_src>

<mosaic_0001>
module attributes {stable_mosaic.version = 11 : i64} {
  func.func @mlp_kernel(%arg0: i32, %arg1: memref<256x4xf32, #tpu.memory_space<vmem>>, %arg2: memref<32x4xf32, #tpu.memory_space<vmem>>, %arg3: memref<32x1xf32, #tpu.memory_space<vmem>>, %arg4: memref<2x32x32xf32, #tpu.memory_space<vmem>>, %arg5: memref<2x32x1xf32, #tpu.memory_space<vmem>>, %arg6: memref<2x32x1xf32, #tpu.memory_space<vmem>>, %arg7: memref<2x32x1xf32, #tpu.memory_space<vmem>>, %arg8: memref<3x32xf32, #tpu.memory_space<vmem>>, %arg9: memref<3x1xf32, #tpu.memory_space<vmem>>, %arg10: memref<3x256xf32, #tpu.memory_space<vmem>>) attributes {dimension_semantics = [#tpu.dimension_semantics<parallel>], iteration_bounds = array<i64: 1>, scalar_prefetch = 0 : i64, scratch_operands = 0 : i64, tpu.core_type = #tpu.core_type<tc>, window_params = [{transform_indices = @transform_0, window_bounds = array<i64: 256, 4>}, {pipeline_mode = #tpu.pipeline_mode<synchronous>, transform_indices = @transform_1, window_bounds = array<i64: 32, 4>}, {pipeline_mode = #tpu.pipeline_mode<synchronous>, transform_indices = @transform_2, window_bounds = array<i64: 32, 1>}, {pipeline_mode = #tpu.pipeline_mode<synchronous>, transform_indices = @transform_3, window_bounds = array<i64: 2, 32, 32>}, {pipeline_mode = #tpu.pipeline_mode<synchronous>, transform_indices = @transform_4, window_bounds = array<i64: 2, 32, 1>}, {pipeline_mode = #tpu.pipeline_mode<synchronous>, transform_indices = @transform_5, window_bounds = array<i64: 2, 32, 1>}, {pipeline_mode = #tpu.pipeline_mode<synchronous>, transform_indices = @transform_6, window_bounds = array<i64: 2, 32, 1>}, {pipeline_mode = #tpu.pipeline_mode<synchronous>, transform_indices = @transform_7, window_bounds = array<i64: 3, 32>}, {pipeline_mode = #tpu.pipeline_mode<synchronous>, transform_indices = @transform_8, window_bounds = array<i64: 3, 1>}, {transform_indices = @transform_9, window_bounds = array<i64: 3, 256>}]} {
    %c0 = arith.constant 0 : index
    %c0_0 = arith.constant 0 : index
    %0 = vector.load %arg2[%c0, %c0_0] : memref<32x4xf32, #tpu.memory_space<vmem>>, vector<32x4xf32>
    %c0_1 = arith.constant 0 : index
    %c0_2 = arith.constant 0 : index
    %1 = vector.load %arg1[%c0_1, %c0_2] : memref<256x4xf32, #tpu.memory_space<vmem>>, vector<256x4xf32>
    %cst = arith.constant dense<0.000000e+00> : vector<32x256xf32>
    %2 = tpu.matmul %0, %1, %cst {dimension_numbers = #tpu.dot_dimension_numbers<[1], [1], [0], [0], [0, 0, 1, 0], [], []>} : vector<32x4xf32>, vector<256x4xf32>, vector<32x256xf32> -> vector<32x256xf32>
    %c0_3 = arith.constant 0 : index
    %c0_4 = arith.constant 0 : index
    %3 = vector.load %arg3[%c0_3, %c0_4] : memref<32x1xf32, #tpu.memory_space<vmem>>, vector<32x1xf32>
    %4 = vector.broadcast %3 : vector<32x1xf32> to vector<32x256xf32>
    %5 = arith.addf %2, %4 : vector<32x256xf32>
    %6 = math.tanh %5 : vector<32x256xf32>
    %c0_5 = arith.constant 0 : index
    %c0_6 = arith.constant 0 : index
    %c0_7 = arith.constant 0 : index
    %7 = vector.load %arg4[%c0_5, %c0_6, %c0_7] : memref<2x32x32xf32, #tpu.memory_space<vmem>>, vector<1x32x32xf32>
    %8 = vector.shape_cast %7 : vector<1x32x32xf32> to vector<32x32xf32>
    %cst_8 = arith.constant dense<0.000000e+00> : vector<32x256xf32>
    %9 = tpu.matmul %8, %6, %cst_8 {dimension_numbers = #tpu.dot_dimension_numbers<[1], [0], [0], [1], [0, 0, 1, 1], [], []>} : vector<32x32xf32>, vector<32x256xf32>, vector<32x256xf32> -> vector<32x256xf32>
    %c0_9 = arith.constant 0 : index
    %c0_10 = arith.constant 0 : index
    %c0_11 = arith.constant 0 : index
    %10 = vector.load %arg5[%c0_9, %c0_10, %c0_11] : memref<2x32x1xf32, #tpu.memory_space<vmem>>, vector<1x32x1xf32>
    %11 = vector.shape_cast %10 : vector<1x32x1xf32> to vector<32x1xf32>
    %12 = vector.broadcast %11 : vector<32x1xf32> to vector<32x256xf32>
    %13 = arith.addf %9, %12 : vector<32x256xf32>
    %cst_12 = arith.constant dense<0.000000e+00> : vector<256xf32>
    %14 = vector.multi_reduction <add>, %13, %cst_12 [0] : vector<32x256xf32> to vector<256xf32>
    %15 = vector.shape_cast %14 : vector<256xf32> to vector<1x256xf32>
    %cst_13 = arith.constant 3.200000e+01 : f32
    %16 = vector.broadcast %cst_13 : f32 to vector<1x256xf32>
    %17 = arith.divf %15, %16 : vector<1x256xf32>
    %18 = vector.broadcast %17 : vector<1x256xf32> to vector<32x256xf32>
    %19 = arith.subf %13, %18 : vector<32x256xf32>
    %20 = arith.mulf %19, %19 : vector<32x256xf32>
    %cst_14 = arith.constant dense<0.000000e+00> : vector<256xf32>
    %21 = vector.multi_reduction <add>, %20, %cst_14 [0] : vector<32x256xf32> to vector<256xf32>
    %22 = vector.shape_cast %21 : vector<256xf32> to vector<1x256xf32>
    %cst_15 = arith.constant 3.200000e+01 : f32
    %23 = vector.broadcast %cst_15 : f32 to vector<1x256xf32>
    %24 = arith.divf %22, %23 : vector<1x256xf32>
    %25 = vector.broadcast %17 : vector<1x256xf32> to vector<32x256xf32>
    %26 = arith.subf %13, %25 : vector<32x256xf32>
    %cst_16 = arith.constant 9.99999974E-6 : f32
    %27 = vector.broadcast %cst_16 : f32 to vector<1x256xf32>
    %28 = arith.addf %24, %27 : vector<1x256xf32>
    %29 = math.rsqrt %28 : vector<1x256xf32>
    %30 = vector.broadcast %29 : vector<1x256xf32> to vector<32x256xf32>
    %31 = arith.mulf %26, %30 : vector<32x256xf32>
    %c0_17 = arith.constant 0 : index
    %c0_18 = arith.constant 0 : index
    %c0_19 = arith.constant 0 : index
    %32 = vector.load %arg6[%c0_17, %c0_18, %c0_19] : memref<2x32x1xf32, #tpu.memory_space<vmem>>, vector<1x32x1xf32>
    %33 = vector.shape_cast %32 : vector<1x32x1xf32> to vector<32x1xf32>
    %34 = vector.broadcast %33 : vector<32x1xf32> to vector<32x256xf32>
    %35 = arith.mulf %31, %34 : vector<32x256xf32>
    %c0_20 = arith.constant 0 : index
    %c0_21 = arith.constant 0 : index
    %c0_22 = arith.constant 0 : index
    %36 = vector.load %arg7[%c0_20, %c0_21, %c0_22] : memref<2x32x1xf32, #tpu.memory_space<vmem>>, vector<1x32x1xf32>
    %37 = vector.shape_cast %36 : vector<1x32x1xf32> to vector<32x1xf32>
    %38 = vector.broadcast %37 : vector<32x1xf32> to vector<32x256xf32>
    %39 = arith.addf %35, %38 : vector<32x256xf32>
    %40 = math.tanh %39 : vector<32x256xf32>
    %c1 = arith.constant 1 : index
    %c0_23 = arith.constant 0 : index
    %c0_24 = arith.constant 0 : index
    %41 = vector.load %arg4[%c1, %c0_23, %c0_24] : memref<2x32x32xf32, #tpu.memory_space<vmem>>, vector<1x32x32xf32>
    %42 = vector.shape_cast %41 : vector<1x32x32xf32> to vector<32x32xf32>
    %cst_25 = arith.constant dense<0.000000e+00> : vector<32x256xf32>
    %43 = tpu.matmul %42, %40, %cst_25 {dimension_numbers = #tpu.dot_dimension_numbers<[1], [0], [0], [1], [0, 0, 1, 1], [], []>} : vector<32x32xf32>, vector<32x256xf32>, vector<32x256xf32> -> vector<32x256xf32>
    %c1_26 = arith.constant 1 : index
    %c0_27 = arith.constant 0 : index
    %c0_28 = arith.constant 0 : index
    %44 = vector.load %arg5[%c1_26, %c0_27, %c0_28] : memref<2x32x1xf32, #tpu.memory_space<vmem>>, vector<1x32x1xf32>
    %45 = vector.shape_cast %44 : vector<1x32x1xf32> to vector<32x1xf32>
    %46 = vector.broadcast %45 : vector<32x1xf32> to vector<32x256xf32>
    %47 = arith.addf %43, %46 : vector<32x256xf32>
    %cst_29 = arith.constant dense<0.000000e+00> : vector<256xf32>
    %48 = vector.multi_reduction <add>, %47, %cst_29 [0] : vector<32x256xf32> to vector<256xf32>
    %49 = vector.shape_cast %48 : vector<256xf32> to vector<1x256xf32>
    %cst_30 = arith.constant 3.200000e+01 : f32
    %50 = vector.broadcast %cst_30 : f32 to vector<1x256xf32>
    %51 = arith.divf %49, %50 : vector<1x256xf32>
    %52 = vector.broadcast %51 : vector<1x256xf32> to vector<32x256xf32>
    %53 = arith.subf %47, %52 : vector<32x256xf32>
    %54 = arith.mulf %53, %53 : vector<32x256xf32>
    %cst_31 = arith.constant dense<0.000000e+00> : vector<256xf32>
    %55 = vector.multi_reduction <add>, %54, %cst_31 [0] : vector<32x256xf32> to vector<256xf32>
    %56 = vector.shape_cast %55 : vector<256xf32> to vector<1x256xf32>
    %cst_32 = arith.constant 3.200000e+01 : f32
    %57 = vector.broadcast %cst_32 : f32 to vector<1x256xf32>
    %58 = arith.divf %56, %57 : vector<1x256xf32>
    %59 = vector.broadcast %51 : vector<1x256xf32> to vector<32x256xf32>
    %60 = arith.subf %47, %59 : vector<32x256xf32>
    %cst_33 = arith.constant 9.99999974E-6 : f32
    %61 = vector.broadcast %cst_33 : f32 to vector<1x256xf32>
    %62 = arith.addf %58, %61 : vector<1x256xf32>
    %63 = math.rsqrt %62 : vector<1x256xf32>
    %64 = vector.broadcast %63 : vector<1x256xf32> to vector<32x256xf32>
    %65 = arith.mulf %60, %64 : vector<32x256xf32>
    %c1_34 = arith.constant 1 : index
    %c0_35 = arith.constant 0 : index
    %c0_36 = arith.constant 0 : index
    %66 = vector.load %arg6[%c1_34, %c0_35, %c0_36] : memref<2x32x1xf32, #tpu.memory_space<vmem>>, vector<1x32x1xf32>
    %67 = vector.shape_cast %66 : vector<1x32x1xf32> to vector<32x1xf32>
    %68 = vector.broadcast %67 : vector<32x1xf32> to vector<32x256xf32>
    %69 = arith.mulf %65, %68 : vector<32x256xf32>
    %c1_37 = arith.constant 1 : index
    %c0_38 = arith.constant 0 : index
    %c0_39 = arith.constant 0 : index
    %70 = vector.load %arg7[%c1_37, %c0_38, %c0_39] : memref<2x32x1xf32, #tpu.memory_space<vmem>>, vector<1x32x1xf32>
    %71 = vector.shape_cast %70 : vector<1x32x1xf32> to vector<32x1xf32>
    %72 = vector.broadcast %71 : vector<32x1xf32> to vector<32x256xf32>
    %73 = arith.addf %69, %72 : vector<32x256xf32>
    %74 = math.tanh %73 : vector<32x256xf32>
    %c0_40 = arith.constant 0 : index
    %c0_41 = arith.constant 0 : index
    %75 = vector.load %arg8[%c0_40, %c0_41] : memref<3x32xf32, #tpu.memory_space<vmem>>, vector<3x32xf32>
    %cst_42 = arith.constant dense<0.000000e+00> : vector<3x256xf32>
    %76 = tpu.matmul %75, %74, %cst_42 {dimension_numbers = #tpu.dot_dimension_numbers<[1], [0], [0], [1], [0, 0, 1, 1], [], []>} : vector<3x32xf32>, vector<32x256xf32>, vector<3x256xf32> -> vector<3x256xf32>
    %c0_43 = arith.constant 0 : index
    %c0_44 = arith.constant 0 : index
    %77 = vector.load %arg9[%c0_43, %c0_44] : memref<3x1xf32, #tpu.memory_space<vmem>>, vector<3x1xf32>
    %78 = vector.broadcast %77 : vector<3x1xf32> to vector<3x256xf32>
    %79 = arith.addf %76, %78 : vector<3x256xf32>
    %c0_45 = arith.constant 0 : index
    %c0_46 = arith.constant 0 : index
    %80 = vector.load %arg10[%c0_45, %c0_46] : memref<3x256xf32, #tpu.memory_space<vmem>>, vector<3x256xf32>
    tpu.vector_store %arg10[%c0_45, %c0_46], %79 {strides = array<i32>} : memref<3x256xf32, #tpu.memory_space<vmem>>, vector<3x256xf32>,
    return
  }
  func.func @transform_0(%arg0: i32) -> (i32, i32) {
    %c0_i32 = arith.constant 0 : i32
    %c0_i32_0 = arith.constant 0 : i32
    return %arg0, %c0_i32 : i32, i32
  }
  func.func @transform_1(%arg0: i32) -> (i32, i32) {
    %c0_i32 = arith.constant 0 : i32
    %c0_i32_0 = arith.constant 0 : i32
    %c0_i32_1 = arith.constant 0 : i32
    return %c0_i32, %c0_i32_0 : i32, i32
  }
  func.func @transform_2(%arg0: i32) -> (i32, i32) {
    %c0_i32 = arith.constant 0 : i32
    %c0_i32_0 = arith.constant 0 : i32
    %c0_i32_1 = arith.constant 0 : i32
    return %c0_i32, %c0_i32_0 : i32, i32
  }
  func.func @transform_3(%arg0: i32) -> (i32, i32, i32) {
    %c0_i32 = arith.constant 0 : i32
    %c0_i32_0 = arith.constant 0 : i32
    %c0_i32_1 = arith.constant 0 : i32
    %c0_i32_2 = arith.constant 0 : i32
    return %c0_i32, %c0_i32_0, %c0_i32_1 : i32, i32, i32
  }
  func.func @transform_4(%arg0: i32) -> (i32, i32, i32) {
    %c0_i32 = arith.constant 0 : i32
    %c0_i32_0 = arith.constant 0 : i32
    %c0_i32_1 = arith.constant 0 : i32
    %c0_i32_2 = arith.constant 0 : i32
    return %c0_i32, %c0_i32_0, %c0_i32_1 : i32, i32, i32
  }
  func.func @transform_5(%arg0: i32) -> (i32, i32, i32) {
    %c0_i32 = arith.constant 0 : i32
    %c0_i32_0 = arith.constant 0 : i32
    %c0_i32_1 = arith.constant 0 : i32
    %c0_i32_2 = arith.constant 0 : i32
    return %c0_i32, %c0_i32_0, %c0_i32_1 : i32, i32, i32
  }
  func.func @transform_6(%arg0: i32) -> (i32, i32, i32) {
    %c0_i32 = arith.constant 0 : i32
    %c0_i32_0 = arith.constant 0 : i32
    %c0_i32_1 = arith.constant 0 : i32
    %c0_i32_2 = arith.constant 0 : i32
    return %c0_i32, %c0_i32_0, %c0_i32_1 : i32, i32, i32
  }
  func.func @transform_7(%arg0: i32) -> (i32, i32) {
    %c0_i32 = arith.constant 0 : i32
    %c0_i32_0 = arith.constant 0 : i32
    %c0_i32_1 = arith.constant 0 : i32
    return %c0_i32, %c0_i32_0 : i32, i32
  }
  func.func @transform_8(%arg0: i32) -> (i32, i32) {
    %c0_i32 = arith.constant 0 : i32
    %c0_i32_0 = arith.constant 0 : i32
    %c0_i32_1 = arith.constant 0 : i32
    return %c0_i32, %c0_i32_0 : i32, i32
  }
  func.func @transform_9(%arg0: i32) -> (i32, i32) {
    %c0_i32 = arith.constant 0 : i32
    %c0_i32_0 = arith.constant 0 : i32
    return %c0_i32, %arg0 : i32, i32
  }
}

</mosaic_0001>

<llo_original>
// kernel: tpu_custom_call.1
$region0: #{tpu_custom_call.1}
  #allocation0 [shape = 'u32[]', space=smem, size = 0x4, offset = 0x4, fixed_abs, tag = 'smem constant byte address 0x4 - core index']
  #allocation1 [shape = 'u32[144,128]{1,0:T(1,128)}', space=vmem, size = 0x12000, scoped, tag = 'internal scratch']
  %s0 = inlined_call_operand.vmem [shape: f32[256,4], index: 0, kind: input, shape index: {}]
  %s1 = inlined_call_operand.vmem [shape: f32[32,4], index: 1, kind: input, shape index: {}]
  %s2 = inlined_call_operand.vmem [shape: f32[32,1], index: 2, kind: input, shape index: {}]
  %s3 = inlined_call_operand.vmem [shape: f32[2,32,32], index: 3, kind: input, shape index: {}]
  %s4 = inlined_call_operand.vmem [shape: f32[2,32,1], index: 4, kind: input, shape index: {}]
  %s5 = inlined_call_operand.vmem [shape: f32[2,32,1], index: 5, kind: input, shape index: {}]
  %s6 = inlined_call_operand.vmem [shape: f32[2,32,1], index: 6, kind: input, shape index: {}]
  %s7 = inlined_call_operand.vmem [shape: f32[3,32], index: 7, kind: input, shape index: {}]
  %s8 = inlined_call_operand.vmem [shape: f32[3,1], index: 8, kind: input, shape index: {}]
  %s9 = inlined_call_operand.hbm [shape: f32[3,256], index: 9, kind: output, shape index: {}]
  %s10 = sld [smem:[#allocation0]]
  $region46: #{tpu_custom_call.1} parent=0
    _
  %s12 = ssub.s32 1, %s10
  %s13 = scalar_select 0, %s12, %s10
  $region1: #{tpu_custom_call.1} parent=0
    #allocation2 [shape = 'u8[4096]{0}', space=vmem, size = 0x1000, scoped, tag = 'output window, operand 0, single buffered']
    #allocation3 [shape = 's32[1]{0}', space=sflag, size = 0x4, scoped, tag = 'scoped memory for tpu_custom_call.1']
    %14 = vsyncpa [#allocation3], 0
    // Predicated region
    $region2: #{tpu_custom_call.1} parent=1 // pred_check
      _
    $region3: #{tpu_custom_call.1} parent=1 // pred_check_branch
      %16 = sbr.rel (0) target = $region5
    $region4: #{tpu_custom_call.1} parent=1 // pred_region
      _
    $region5: #{tpu_custom_call.1} parent=1 // pred_fallthru
      _
    // Predicated region
    $region6: #{tpu_custom_call.1} parent=1 // pred_check
      _
    $region7: #{tpu_custom_call.1} parent=1 // pred_check_branch
      %18 = sbr.rel (0) target = $region9
    $region8: #{tpu_custom_call.1} parent=1 // pred_region
      _
    $region9: #{tpu_custom_call.1} parent=1 // pred_fallthru
      _
    // Predicated region
    $region10: #{tpu_custom_call.1} parent=1 // pred_check
      _
    $region11: #{tpu_custom_call.1} parent=1 // pred_check_branch
      %20 = sbr.rel (0) target = $region13
    $region12: #{tpu_custom_call.1} parent=1 // pred_region
      _
    $region13: #{tpu_custom_call.1} parent=1 // pred_fallthru
      _
    // Predicated region
    $region14: #{tpu_custom_call.1} parent=1 // pred_check
      _
    $region15: #{tpu_custom_call.1} parent=1 // pred_check_branch
      %22 = sbr.rel (0) target = $region17
    $region16: #{tpu_custom_call.1} parent=1 // pred_region
      _
    $region17: #{tpu_custom_call.1} parent=1 // pred_fallthru
      _
    // Predicated region
    $region18: #{tpu_custom_call.1} parent=1 // pred_check
      _
    $region19: #{tpu_custom_call.1} parent=1 // pred_check_branch
      %24 = sbr.rel (0) target = $region21
    $region20: #{tpu_custom_call.1} parent=1 // pred_region
      _
    $region21: #{tpu_custom_call.1} parent=1 // pred_fallthru
      _
    // Predicated region
    $region22: #{tpu_custom_call.1} parent=1 // pred_check
      _
    $region23: #{tpu_custom_call.1} parent=1 // pred_check_branch
      %26 = sbr.rel (0) target = $region25
    $region24: #{tpu_custom_call.1} parent=1 // pred_region
      _
    $region25: #{tpu_custom_call.1} parent=1 // pred_fallthru
      _
    // Predicated region
    $region26: #{tpu_custom_call.1} parent=1 // pred_check
      _
    $region27: #{tpu_custom_call.1} parent=1 // pred_check_branch
      %28 = sbr.rel (0) target = $region29
    $region28: #{tpu_custom_call.1} parent=1 // pred_region
      _
    $region29: #{tpu_custom_call.1} parent=1 // pred_fallthru
      _
    // Predicated region
    $region30: #{tpu_custom_call.1} parent=1 // pred_check
      _
    $region31: #{tpu_custom_call.1} parent=1 // pred_check_branch
      %30 = sbr.rel (0) target = $region33
    $region32: #{tpu_custom_call.1} parent=1 // pred_region
      _
    $region33: #{tpu_custom_call.1} parent=1 // pred_fallthru
      _
    // Predicated region
    $region34: #{tpu_custom_call.1} parent=1 // pred_check
      _
    $region35: #{tpu_custom_call.1} parent=1 // pred_check_branch
      %32 = sbr.rel (0) target = $region37
    $region36: #{tpu_custom_call.1} parent=1 // pred_region
      _
    $region37: #{tpu_custom_call.1} parent=1 // pred_fallthru
      _
    %v33 = vld [vmem:[%s1] sm:$0xff]
    %v34 = vld [vmem:[%s1 + $0x8] sm:$0xff]
    %v35 = vld [vmem:[%s1 + $0x10] sm:$0xff]
    %v36 = vld [vmem:[%s1 + $0x18] sm:$0xff]
    %v37 = vld [vmem:[%s0] sm:$0xff]
    %v38 = vld [vmem:[%s0 + $0x8] sm:$0xff]
    %v39 = vld [vmem:[%s0 + $0x10] sm:$0xff]
    %v40 = vld [vmem:[%s0 + $0x18] sm:$0xff]
    %v41 = vld [vmem:[%s0 + $0x20] sm:$0xff]
    %v42 = vld [vmem:[%s0 + $0x28] sm:$0xff]
    %v43 = vld [vmem:[%s0 + $0x30] sm:$0xff]
    %v44 = vld [vmem:[%s0 + $0x38] sm:$0xff]
    %v45 = vld [vmem:[%s0 + $0x40] sm:$0xff]
    %v46 = vld [vmem:[%s0 + $0x48] sm:$0xff]
    %v47 = vld [vmem:[%s0 + $0x50] sm:$0xff]
    %v48 = vld [vmem:[%s0 + $0x58] sm:$0xff]
    %v49 = vld [vmem:[%s0 + $0x60] sm:$0xff]
    %v50 = vld [vmem:[%s0 + $0x68] sm:$0xff]
    %v51 = vld [vmem:[%s0 + $0x70] sm:$0xff]
    %v52 = vld [vmem:[%s0 + $0x78] sm:$0xff]
    %v53 = vld [vmem:[%s0 + $0x80] sm:$0xff]
    %v54 = vld [vmem:[%s0 + $0x88] sm:$0xff]
    %v55 = vld [vmem:[%s0 + $0x90] sm:$0xff]
    %v56 = vld [vmem:[%s0 + $0x98] sm:$0xff]
    %v57 = vld [vmem:[%s0 + $0xa0] sm:$0xff]
    %v58 = vld [vmem:[%s0 + $0xa8] sm:$0xff]
    %v59 = vld [vmem:[%s0 + $0xb0] sm:$0xff]
    %v60 = vld [vmem:[%s0 + $0xb8] sm:$0xff]
    %v61 = vld [vmem:[%s0 + $0xc0] sm:$0xff]
    %v62 = vld [vmem:[%s0 + $0xc8] sm:$0xff]
    %v63 = vld [vmem:[%s0 + $0xd0] sm:$0xff]
    %v64 = vld [vmem:[%s0 + $0xd8] sm:$0xff]
    %v65 = vld [vmem:[%s0 + $0xe0] sm:$0xff]
    %v66 = vld [vmem:[%s0 + $0xe8] sm:$0xff]
    %v67 = vld [vmem:[%s0 + $0xf0] sm:$0xff]
    %v68 = vld [vmem:[%s0 + $0xf8] sm:$0xff]
    %v69 = vld [vmem:[%s2] sm:$0xff]
    %v70 = vld [vmem:[%s2 + $0x8] sm:$0xff]
    %v71 = vld [vmem:[%s2 + $0x10] sm:$0xff]
    %v72 = vld [vmem:[%s2 + $0x18] sm:$0xff]
    %74 = vset.pattern.permute.xlu0 0
    %75 = vperm.xlu0 %74, %v69
    %v76 = vpop.permute.xlu0 %75
    %79 = vset.pattern.permute.xlu0 0
    %80 = vperm.xlu0 %79, %v70
    %v81 = vpop.permute.xlu0 %80
    %84 = vset.pattern.permute.xlu0 0
    %85 = vperm.xlu0 %84, %v71
    %v86 = vpop.permute.xlu0 %85
    %89 = vset.pattern.permute.xlu0 0
    %90 = vperm.xlu0 %89, %v72
    %v91 = vpop.permute.xlu0 %90
    %vm93 = vcmask 31744
    %v95 = vsel %vm93, %v33, 0
    %v98 = vsel %vm93, %v34, 0
    %v101 = vsel %vm93, %v35, 0
    %v104 = vsel %vm93, %v36, 0
    %v107 = vsel %vm93, %v37, 0
    %v110 = vsel %vm93, %v38, 0
    %v113 = vsel %vm93, %v39, 0
    %v116 = vsel %vm93, %v40, 0
    %v119 = vsel %vm93, %v41, 0
    %v122 = vsel %vm93, %v42, 0
    %v125 = vsel %vm93, %v43, 0
    %v128 = vsel %vm93, %v44, 0
    %v131 = vsel %vm93, %v45, 0
    %v134 = vsel %vm93, %v46, 0
    %v137 = vsel %vm93, %v47, 0
    %v140 = vsel %vm93, %v48, 0
    %v143 = vsel %vm93, %v49, 0
    %v146 = vsel %vm93, %v50, 0
    %v149 = vsel %vm93, %v51, 0
    %v152 = vsel %vm93, %v52, 0
    %v155 = vsel %vm93, %v53, 0
    %v158 = vsel %vm93, %v54, 0
    %v161 = vsel %vm93, %v55, 0
    %v164 = vsel %vm93, %v56, 0
    %v167 = vsel %vm93, %v57, 0
    %v170 = vsel %vm93, %v58, 0
    %v173 = vsel %vm93, %v59, 0
    %v176 = vsel %vm93, %v60, 0
    %v179 = vsel %vm93, %v61, 0
    %v182 = vsel %vm93, %v62, 0
    %v185 = vsel %vm93, %v63, 0
    %v188 = vsel %vm93, %v64, 0
    %v191 = vsel %vm93, %v65, 0
    %v194 = vsel %vm93, %v66, 0
    %v197 = vsel %vm93, %v67, 0
    %v200 = vsel %vm93, %v68, 0
    %202 = vmatprep.subr.mxu0 0.0
    %203 = vmatpush1.xpose.msra.mxu0 %v152
    %204 = vmatprep.subr.mxu0 0.0
    %205 = vmatpush1.xpose.msra.mxu0 %v149
    %206 = vmatprep.subr.mxu0 0.0
    %207 = vmatpush1.xpose.msra.mxu0 %v146
    %208 = vmatprep.subr.mxu0 0.0
    %209 = vmatpush1.xpose.msra.mxu0 %v143
    %210 = vmatprep.subr.mxu0 0.0
    %211 = vmatpush1.xpose.msra.mxu0 %v140
    %212 = vmatprep.subr.mxu0 0.0
    %213 = vmatpush1.xpose.msra.mxu0 %v137
    %214 = vmatprep.subr.mxu0 0.0
    %215 = vmatpush1.xpose.msra.mxu0 %v134
    %216 = vmatprep.subr.mxu0 0.0
    %217 = vmatpush1.xpose.msra.mxu0 %v131
    %218 = vmatprep.subr.mxu0 0.0
    %219 = vmatpush1.xpose.msra.mxu0 %v128
    %220 = vmatprep.subr.mxu0 0.0
    %221 = vmatpush1.xpose.msra.mxu0 %v125
    %222 = vmatprep.subr.mxu0 0.0
    %223 = vmatpush1.xpose.msra.mxu0 %v122
    %224 = vmatprep.subr.mxu0 0.0
    %225 = vmatpush1.xpose.msra.mxu0 %v119
    %226 = vmatprep.subr.mxu0 0.0
    %227 = vmatpush1.xpose.msra.mxu0 %v116
    %228 = vmatprep.subr.mxu0 0.0
    %229 = vmatpush1.xpose.msra.mxu0 %v113
    %230 = vmatprep.subr.mxu0 0.0
    %231 = vmatpush1.xpose.msra.mxu0 %v110
    %232 = vmatprep.subr.mxu0 0.0
    %233 = vmatpush1.xpose.msra.mxu0 %v107
    %234 = vmatprep.subr.mxu0 0.0
    %235 = vmatpush2.xpose.msra.mxu0 %v200
    %236 = vmatprep.subr.mxu0 0.0
    %237 = vmatpush2.xpose.msra.mxu0 %v197
    %238 = vmatprep.subr.mxu0 0.0
    %239 = vmatpush2.xpose.msra.mxu0 %v194
    %240 = vmatprep.subr.mxu0 0.0
    %241 = vmatpush2.xpose.msra.mxu0 %v191
    %242 = vmatprep.subr.mxu0 0.0
    %243 = vmatpush2.xpose.msra.mxu0 %v188
    %244 = vmatprep.subr.mxu0 0.0
    %245 = vmatpush2.xpose.msra.mxu0 %v185
    %246 = vmatprep.subr.mxu0 0.0
    %247 = vmatpush2.xpose.msra.mxu0 %v182
    %248 = vmatprep.subr.mxu0 0.0
    %249 = vmatpush2.xpose.msra.mxu0 %v179
    %250 = vmatprep.subr.mxu0 0.0
    %251 = vmatpush2.xpose.msra.mxu0 %v176
    %252 = vmatprep.subr.mxu0 0.0
    %253 = vmatpush2.xpose.msra.mxu0 %v173
    %254 = vmatprep.subr.mxu0 0.0
    %255 = vmatpush2.xpose.msra.mxu0 %v170
    %256 = vmatprep.subr.mxu0 0.0
    %257 = vmatpush2.xpose.msra.mxu0 %v167
    %258 = vmatprep.subr.mxu0 0.0
    %259 = vmatpush2.xpose.msra.mxu0 %v164
    %260 = vmatprep.subr.mxu0 0.0
    %261 = vmatpush2.xpose.msra.mxu0 %v161
    %262 = vmatprep.subr.mxu0 0.0
    %263 = vmatpush2.xpose.msra.mxu0 %v158
    %264 = vmatprep.subr.mxu0 0.0
    %265 = vmatpush2.xpose.msra.mxu0 %v155
    %266 = vmatprep.mubr.f32.mxu0 0.0
    %267 = vmatmul.mubr.f32.gmra.mxu0 %v95
    %v268 = vpop.f32.mrf.mxu0
    %v269 = vadd.f32 %v76, %v268
    %v270 = vpop.f32.mrf.mxu0
    %v271 = vadd.f32 %v76, %v270
    %272 = vmatprep.mubr.f32.mxu0 0.0
    %273 = vmatmul.mubr.f32.gmra.mxu0 %v98
    %v274 = vpop.f32.mrf.mxu0
    %v275 = vadd.f32 %v81, %v274
    %v276 = vpop.f32.mrf.mxu0
    %v277 = vadd.f32 %v81, %v276
    %278 = vmatprep.mubr.f32.mxu0 0.0
    %279 = vmatmul.mubr.f32.gmra.mxu0 %v101
    %v280 = vpop.f32.mrf.mxu0
    %v281 = vadd.f32 %v86, %v280
    %v282 = vpop.f32.mrf.mxu0
    %v283 = vadd.f32 %v86, %v282
    %284 = vmatprep.mubr.f32.mxu0 0.0
    %285 = vmatmul.mubr.f32.gmra.mxu0 %v104
    %v286 = vpop.f32.mrf.mxu0
    %v287 = vadd.f32 %v91, %v286
    %v288 = vpop.f32.mrf.mxu0
    %v289 = vadd.f32 %v91, %v288
    %290 = vdwg.mxu0
    %v291 = vtanh.pop %v269
    %v292 = vtanh.pop %v271
    %v293 = vtanh.pop %v275
    %v294 = vtanh.pop %v277
    %v295 = vtanh.pop %v281
    %v296 = vtanh.pop %v283
    %v297 = vtanh.pop %v287
    %v298 = vtanh.pop %v289
    %v299 = vld [vmem:[%s3] sm:$0xff]
    %v300 = vld [vmem:[%s3 + $0x8] sm:$0xff]
    %v301 = vld [vmem:[%s3 + $0x10] sm:$0xff]
    %v302 = vld [vmem:[%s3 + $0x18] sm:$0xff]
    %v303 = vld [vmem:[%s4] sm:$0xff]
    %v304 = vld [vmem:[%s4 + $0x8] sm:$0xff]
    %v305 = vld [vmem:[%s4 + $0x10] sm:$0xff]
    %v306 = vld [vmem:[%s4 + $0x18] sm:$0xff]
    %308 = vset.pattern.permute.xlu0 0
    %309 = vperm.xlu0 %308, %v303
    %v310 = vpop.permute.xlu0 %309
    %313 = vset.pattern.permute.xlu0 0
    %314 = vperm.xlu0 %313, %v304
    %v315 = vpop.permute.xlu0 %314
    %318 = vset.pattern.permute.xlu0 0
    %319 = vperm.xlu0 %318, %v305
    %v320 = vpop.permute.xlu0 %319
    %323 = vset.pattern.permute.xlu0 0
    %324 = vperm.xlu0 %323, %v306
    %v325 = vpop.permute.xlu0 %324
    %vm327 = vcmask 261120
    %v329 = vsel %vm327, %v299, 0
    %v332 = vsel %vm327, %v300, 0
    %v335 = vsel %vm327, %v301, 0
    %v338 = vsel %vm327, %v302, 0
    %340 = vmatprep.subr.mxu0 0.0
    %341 = vmatpush1.msra.mxu0 0.0
    %342 = vmatprep.subr.mxu0 0.0
    %343 = vmatpush1.msra.mxu0 0.0
    %344 = vmatprep.subr.mxu0 0.0
    %345 = vmatpush1.msra.mxu0 0.0
    %346 = vmatprep.subr.mxu0 0.0
    %347 = vmatpush1.msra.mxu0 0.0
    %348 = vmatprep.subr.mxu0 0.0
    %349 = vmatpush1.msra.mxu0 0.0
    %350 = vmatprep.subr.mxu0 0.0
    %351 = vmatpush1.msra.mxu0 0.0
    %352 = vmatprep.subr.mxu0 0.0
    %353 = vmatpush1.msra.mxu0 0.0
    %354 = vmatprep.subr.mxu0 0.0
    %355 = vmatpush1.msra.mxu0 0.0
    %356 = vmatprep.subr.mxu0 0.0
    %357 = vmatpush1.msra.mxu0 0.0
    %358 = vmatprep.subr.mxu0 0.0
    %359 = vmatpush1.msra.mxu0 0.0
    %360 = vmatprep.subr.mxu0 0.0
    %361 = vmatpush1.msra.mxu0 0.0
    %362 = vmatprep.subr.mxu0 0.0
    %363 = vmatpush1.msra.mxu0 0.0
    %364 = vmatprep.subr.mxu0 %v298
    %365 = vmatpush1.msra.mxu0 %v297
    %366 = vmatprep.subr.mxu0 %v296
    %367 = vmatpush1.msra.mxu0 %v295
    %368 = vmatprep.subr.mxu0 %v294
    %369 = vmatpush1.msra.mxu0 %v293
    %370 = vmatprep.subr.mxu0 %v292
    %371 = vmatpush1.msra.mxu0 %v291
    %372 = vmatprep.subr.mxu0 0.0
    %373 = vmatpush2.msra.mxu0 0.0
    %374 = vmatprep.subr.mxu0 0.0
    %375 = vmatpush2.msra.mxu0 0.0
    %376 = vmatprep.subr.mxu0 0.0
    %377 = vmatpush2.msra.mxu0 0.0
    %378 = vmatprep.subr.mxu0 0.0
    %379 = vmatpush2.msra.mxu0 0.0
    %380 = vmatprep.subr.mxu0 0.0
    %381 = vmatpush2.msra.mxu0 0.0
    %382 = vmatprep.subr.mxu0 0.0
    %383 = vmatpush2.msra.mxu0 0.0
    %384 = vmatprep.subr.mxu0 0.0
    %385 = vmatpush2.msra.mxu0 0.0
    %386 = vmatprep.subr.mxu0 0.0
    %387 = vmatpush2.msra.mxu0 0.0
    %388 = vmatprep.subr.mxu0 0.0
    %389 = vmatpush2.msra.mxu0 0.0
    %390 = vmatprep.subr.mxu0 0.0
    %391 = vmatpush2.msra.mxu0 0.0
    %392 = vmatprep.subr.mxu0 0.0
    %393 = vmatpush2.msra.mxu0 0.0
    %394 = vmatprep.subr.mxu0 0.0
    %395 = vmatpush2.msra.mxu0 0.0
    %396 = vmatprep.subr.mxu0 0.0
    %397 = vmatpush2.msra.mxu0 0.0
    %398 = vmatprep.subr.mxu0 0.0
    %399 = vmatpush2.msra.mxu0 0.0
    %400 = vmatprep.subr.mxu0 0.0
    %401 = vmatpush2.msra.mxu0 0.0
    %402 = vmatprep.subr.mxu0 0.0
    %403 = vmatpush2.msra.mxu0 0.0
    %404 = vmatprep.mubr.f32.mxu0 0.0
    %405 = vmatmul.mubr.f32.gmra.mxu0 %v329
    %v406 = vpop.f32.mrf.mxu0
    %v407 = vadd.f32 %v310, %v406
    %v408 = vpop.f32.mrf.mxu0
    %v409 = vadd.f32 %v310, %v408
    %410 = vmatprep.mubr.f32.mxu0 0.0
    %411 = vmatmul.mubr.f32.gmra.mxu0 %v332
    %v412 = vpop.f32.mrf.mxu0
    %v413 = vadd.f32 %v315, %v412
    %v414 = vpop.f32.mrf.mxu0
    %v415 = vadd.f32 %v315, %v414
    %416 = vmatprep.mubr.f32.mxu0 0.0
    %417 = vmatmul.mubr.f32.gmra.mxu0 %v335
    %v418 = vpop.f32.mrf.mxu0
    %v419 = vadd.f32 %v320, %v418
    %v420 = vpop.f32.mrf.mxu0
    %v421 = vadd.f32 %v320, %v420
    %422 = vmatprep.mubr.f32.mxu0 0.0
    %423 = vmatmul.mubr.f32.gmra.mxu0 %v338
    %v424 = vpop.f32.mrf.mxu0
    %v425 = vadd.f32 %v325, %v424
    %v426 = vpop.f32.mrf.mxu0
    %v427 = vadd.f32 %v325, %v426
    %428 = vdwg.mxu0
    %v429 = vadd.f32 %v407, %v413
    %v430 = vadd.f32 %v429, %v419
    %v431 = vadd.f32 %v430, %v425
    %v432 = vrot.slane %v431, 4
    %v433 = vadd.f32 %v431, %v432
    %v434 = vrot.slane %v433, 2
    %v435 = vadd.f32 %v433, %v434
    %v436 = vrot.slane %v435, 1
    %v437 = vadd.f32 %v435, %v436
    %v438 = vadd.f32 %v409, %v415
    %v439 = vadd.f32 %v438, %v421
    %v440 = vadd.f32 %v439, %v427
    %v441 = vrot.slane %v440, 4
    %v442 = vadd.f32 %v440, %v441
    %v443 = vrot.slane %v442, 2
    %v444 = vadd.f32 %v442, %v443
    %v445 = vrot.slane %v444, 1
    %v446 = vadd.f32 %v444, %v445
    %v447 = vrcp.pop 32.0
    %v448 = vmul.f32 %v437, %v447
    %v449 = vmul.f32 %v446, %v447
    %v450 = vsub.f32 %v407, %v448
    %v451 = vsub.f32 %v409, %v449
    %v452 = vsub.f32 %v413, %v448
    %v453 = vsub.f32 %v415, %v449
    %v454 = vsub.f32 %v419, %v448
    %v455 = vsub.f32 %v421, %v449
    %v456 = vsub.f32 %v425, %v448
    %v457 = vsub.f32 %v427, %v449
    %v458 = vmul.f32 %v450, %v450
    %v459 = vmul.f32 %v451, %v451
    %v460 = vmul.f32 %v452, %v452
    %v461 = vmul.f32 %v453, %v453
    %v462 = vmul.f32 %v454, %v454
    %v463 = vmul.f32 %v455, %v455
    %v464 = vmul.f32 %v456, %v456
    %v465 = vmul.f32 %v457, %v457
    %v466 = vadd.f32 %v458, %v460
    %v467 = vadd.f32 %v466, %v462
    %v468 = vadd.f32 %v467, %v464
    %v469 = vrot.slane %v468, 4
    %v470 = vadd.f32 %v468, %v469
    %v471 = vrot.slane %v470, 2
    %v472 = vadd.f32 %v470, %v471
    %v473 = vrot.slane %v472, 1
    %v474 = vadd.f32 %v472, %v473
    %v475 = vadd.f32 %v459, %v461
    %v476 = vadd.f32 %v475, %v463
    %v477 = vadd.f32 %v476, %v465
    %v478 = vrot.slane %v477, 4
    %v479 = vadd.f32 %v477, %v478
    %v480 = vrot.slane %v479, 2
    %v481 = vadd.f32 %v479, %v480
    %v482 = vrot.slane %v481, 1
    %v483 = vadd.f32 %v481, %v482
    %v484 = vmul.f32 %v474, %v447
    %v485 = vmul.f32 %v483, %v447
    %v486 = vadd.f32 %v484, 1e-05
    %v487 = vadd.f32 %v485, 1e-05
    %v488 = vrsqrt.pop %v486
    %v489 = vrsqrt.pop %v487
    %v490 = vmul.f32 %v450, %v488
    %v491 = vmul.f32 %v451, %v489
    %v492 = vmul.f32 %v452, %v488
    %v493 = vmul.f32 %v453, %v489
    %v494 = vmul.f32 %v454, %v488
    %v495 = vmul.f32 %v455, %v489
    %v496 = vmul.f32 %v456, %v488
    %v497 = vmul.f32 %v457, %v489
    %v498 = vld [vmem:[%s5] sm:$0xff]
    %v499 = vld [vmem:[%s5 + $0x8] sm:$0xff]
    %v500 = vld [vmem:[%s5 + $0x10] sm:$0xff]
    %v501 = vld [vmem:[%s5 + $0x18] sm:$0xff]
    %503 = vset.pattern.permute.xlu0 0
    %504 = vperm.xlu0 %503, %v498
    %v505 = vpop.permute.xlu0 %504
    %508 = vset.pattern.permute.xlu0 0
    %509 = vperm.xlu0 %508, %v499
    %v510 = vpop.permute.xlu0 %509
    %513 = vset.pattern.permute.xlu0 0
    %514 = vperm.xlu0 %513, %v500
    %v515 = vpop.permute.xlu0 %514
    %518 = vset.pattern.permute.xlu0 0
    %519 = vperm.xlu0 %518, %v501
    %v520 = vpop.permute.xlu0 %519
    %v522 = vmul.f32 %v490, %v505
    %v523 = vmul.f32 %v491, %v505
    %v524 = vmul.f32 %v492, %v510
    %v525 = vmul.f32 %v493, %v510
    %v526 = vmul.f32 %v494, %v515
    %v527 = vmul.f32 %v495, %v515
    %v528 = vmul.f32 %v496, %v520
    %v529 = vmul.f32 %v497, %v520
    %v530 = vld [vmem:[%s6] sm:$0xff]
    %v531 = vld [vmem:[%s6 + $0x8] sm:$0xff]
    %v532 = vld [vmem:[%s6 + $0x10] sm:$0xff]
    %v533 = vld [vmem:[%s6 + $0x18] sm:$0xff]
    %535 = vset.pattern.permute.xlu0 0
    %536 = vperm.xlu0 %535, %v530
    %v537 = vpop.permute.xlu0 %536
    %540 = vset.pattern.permute.xlu0 0
    %541 = vperm.xlu0 %540, %v531
    %v542 = vpop.permute.xlu0 %541
    %545 = vset.pattern.permute.xlu0 0
    %546 = vperm.xlu0 %545, %v532
    %v547 = vpop.permute.xlu0 %546
    %550 = vset.pattern.permute.xlu0 0
    %551 = vperm.xlu0 %550, %v533
    %v552 = vpop.permute.xlu0 %551
    %v554 = vadd.f32 %v522, %v537
    %v555 = vadd.f32 %v523, %v537
    %v556 = vadd.f32 %v524, %v542
    %v557 = vadd.f32 %v525, %v542
    %v558 = vadd.f32 %v526, %v547
    %v559 = vadd.f32 %v527, %v547
    %v560 = vadd.f32 %v528, %v552
    %v561 = vadd.f32 %v529, %v552
    %v562 = vtanh.pop %v554
    %v563 = vtanh.pop %v555
    %v564 = vtanh.pop %v556
    %v565 = vtanh.pop %v557
    %v566 = vtanh.pop %v558
    %v567 = vtanh.pop %v559
    %v568 = vtanh.pop %v560
    %v569 = vtanh.pop %v561
    %s570 = scalar_lea.vmem %s3, 32
    %v571 = vld [vmem:[%s570] sm:$0xff]
    %v572 = vld [vmem:[%s570 + $0x8] sm:$0xff]
    %v573 = vld [vmem:[%s570 + $0x10] sm:$0xff]
    %v574 = vld [vmem:[%s570 + $0x18] sm:$0xff]
    %s575 = scalar_lea.vmem %s4, 32
    %v576 = vld [vmem:[%s575] sm:$0xff]
    %v577 = vld [vmem:[%s575 + $0x8] sm:$0xff]
    %v578 = vld [vmem:[%s575 + $0x10] sm:$0xff]
    %v579 = vld [vmem:[%s575 + $0x18] sm:$0xff]
    %581 = vset.pattern.permute.xlu0 0
    %582 = vperm.xlu0 %581, %v576
    %v583 = vpop.permute.xlu0 %582
    %586 = vset.pattern.permute.xlu0 0
    %587 = vperm.xlu0 %586, %v577
    %v588 = vpop.permute.xlu0 %587
    %591 = vset.pattern.permute.xlu0 0
    %592 = vperm.xlu0 %591, %v578
    %v593 = vpop.permute.xlu0 %592
    %596 = vset.pattern.permute.xlu0 0
    %597 = vperm.xlu0 %596, %v579
    %v598 = vpop.permute.xlu0 %597
    %v601 = vsel %vm327, %v571, 0
    %v604 = vsel %vm327, %v572, 0
    %v607 = vsel %vm327, %v573, 0
    %v610 = vsel %vm327, %v574, 0
    %612 = vmatprep.subr.mxu0 0.0
    %613 = vmatpush1.msra.mxu0 0.0
    %614 = vmatprep.subr.mxu0 0.0
    %615 = vmatpush1.msra.mxu0 0.0
    %616 = vmatprep.subr.mxu0 0.0
    %617 = vmatpush1.msra.mxu0 0.0
    %618 = vmatprep.subr.mxu0 0.0
    %619 = vmatpush1.msra.mxu0 0.0
    %620 = vmatprep.subr.mxu0 0.0
    %621 = vmatpush1.msra.mxu0 0.0
    %622 = vmatprep.subr.mxu0 0.0
    %623 = vmatpush1.msra.mxu0 0.0
    %624 = vmatprep.subr.mxu0 0.0
    %625 = vmatpush1.msra.mxu0 0.0
    %626 = vmatprep.subr.mxu0 0.0
    %627 = vmatpush1.msra.mxu0 0.0
    %628 = vmatprep.subr.mxu0 0.0
    %629 = vmatpush1.msra.mxu0 0.0
    %630 = vmatprep.subr.mxu0 0.0
    %631 = vmatpush1.msra.mxu0 0.0
    %632 = vmatprep.subr.mxu0 0.0
    %633 = vmatpush1.msra.mxu0 0.0
    %634 = vmatprep.subr.mxu0 0.0
    %635 = vmatpush1.msra.mxu0 0.0
    %636 = vmatprep.subr.mxu0 %v569
    %637 = vmatpush1.msra.mxu0 %v568
    %638 = vmatprep.subr.mxu0 %v567
    %639 = vmatpush1.msra.mxu0 %v566
    %640 = vmatprep.subr.mxu0 %v565
    %641 = vmatpush1.msra.mxu0 %v564
    %642 = vmatprep.subr.mxu0 %v563
    %643 = vmatpush1.msra.mxu0 %v562
    %644 = vmatprep.subr.mxu0 0.0
    %645 = vmatpush2.msra.mxu0 0.0
    %646 = vmatprep.subr.mxu0 0.0
    %647 = vmatpush2.msra.mxu0 0.0
    %648 = vmatprep.subr.mxu0 0.0
    %649 = vmatpush2.msra.mxu0 0.0
    %650 = vmatprep.subr.mxu0 0.0
    %651 = vmatpush2.msra.mxu0 0.0
    %652 = vmatprep.subr.mxu0 0.0
    %653 = vmatpush2.msra.mxu0 0.0
    %654 = vmatprep.subr.mxu0 0.0
    %655 = vmatpush2.msra.mxu0 0.0
    %656 = vmatprep.subr.mxu0 0.0
    %657 = vmatpush2.msra.mxu0 0.0
    %658 = vmatprep.subr.mxu0 0.0
    %659 = vmatpush2.msra.mxu0 0.0
    %660 = vmatprep.subr.mxu0 0.0
    %661 = vmatpush2.msra.mxu0 0.0
    %662 = vmatprep.subr.mxu0 0.0
    %663 = vmatpush2.msra.mxu0 0.0
    %664 = vmatprep.subr.mxu0 0.0
    %665 = vmatpush2.msra.mxu0 0.0
    %666 = vmatprep.subr.mxu0 0.0
    %667 = vmatpush2.msra.mxu0 0.0
    %668 = vmatprep.subr.mxu0 0.0
    %669 = vmatpush2.msra.mxu0 0.0
    %670 = vmatprep.subr.mxu0 0.0
    %671 = vmatpush2.msra.mxu0 0.0
    %672 = vmatprep.subr.mxu0 0.0
    %673 = vmatpush2.msra.mxu0 0.0
    %674 = vmatprep.subr.mxu0 0.0
    %675 = vmatpush2.msra.mxu0 0.0
    %676 = vmatprep.mubr.f32.mxu0 0.0
    %677 = vmatmul.mubr.f32.gmra.mxu0 %v601
    %v678 = vpop.f32.mrf.mxu0
    %v679 = vadd.f32 %v583, %v678
    %v680 = vpop.f32.mrf.mxu0
    %v681 = vadd.f32 %v583, %v680
    %682 = vmatprep.mubr.f32.mxu0 0.0
    %683 = vmatmul.mubr.f32.gmra.mxu0 %v604
    %v684 = vpop.f32.mrf.mxu0
    %v685 = vadd.f32 %v588, %v684
    %v686 = vpop.f32.mrf.mxu0
    %v687 = vadd.f32 %v588, %v686
    %688 = vmatprep.mubr.f32.mxu0 0.0
    %689 = vmatmul.mubr.f32.gmra.mxu0 %v607
    %v690 = vpop.f32.mrf.mxu0
    %v691 = vadd.f32 %v593, %v690
    %v692 = vpop.f32.mrf.mxu0
    %v693 = vadd.f32 %v593, %v692
    %694 = vmatprep.mubr.f32.mxu0 0.0
    %695 = vmatmul.mubr.f32.gmra.mxu0 %v610
    %v696 = vpop.f32.mrf.mxu0
    %v697 = vadd.f32 %v598, %v696
    %v698 = vpop.f32.mrf.mxu0
    %v699 = vadd.f32 %v598, %v698
    %700 = vdwg.mxu0
    %v701 = vadd.f32 %v679, %v685
    %v702 = vadd.f32 %v701, %v691
    %v703 = vadd.f32 %v702, %v697
    %v704 = vrot.slane %v703, 4
    %v705 = vadd.f32 %v703, %v704
    %v706 = vrot.slane %v705, 2
    %v707 = vadd.f32 %v705, %v706
    %v708 = vrot.slane %v707, 1
    %v709 = vadd.f32 %v707, %v708
    %v710 = vadd.f32 %v681, %v687
    %v711 = vadd.f32 %v710, %v693
    %v712 = vadd.f32 %v711, %v699
    %v713 = vrot.slane %v712, 4
    %v714 = vadd.f32 %v712, %v713
    %v715 = vrot.slane %v714, 2
    %v716 = vadd.f32 %v714, %v715
    %v717 = vrot.slane %v716, 1
    %v718 = vadd.f32 %v716, %v717
    %v719 = vmul.f32 %v709, %v447
    %v720 = vmul.f32 %v718, %v447
    %v721 = vsub.f32 %v679, %v719
    %v722 = vsub.f32 %v681, %v720
    %v723 = vsub.f32 %v685, %v719
    %v724 = vsub.f32 %v687, %v720
    %v725 = vsub.f32 %v691, %v719
    %v726 = vsub.f32 %v693, %v720
    %v727 = vsub.f32 %v697, %v719
    %v728 = vsub.f32 %v699, %v720
    %v729 = vmul.f32 %v721, %v721
    %v730 = vmul.f32 %v722, %v722
    %v731 = vmul.f32 %v723, %v723
    %v732 = vmul.f32 %v724, %v724
    %v733 = vmul.f32 %v725, %v725
    %v734 = vmul.f32 %v726, %v726
    %v735 = vmul.f32 %v727, %v727
    %v736 = vmul.f32 %v728, %v728
    %v737 = vadd.f32 %v729, %v731
    %v738 = vadd.f32 %v737, %v733
    %v739 = vadd.f32 %v738, %v735
    %v740 = vrot.slane %v739, 4
    %v741 = vadd.f32 %v739, %v740
    %v742 = vrot.slane %v741, 2
    %v743 = vadd.f32 %v741, %v742
    %v744 = vrot.slane %v743, 1
    %v745 = vadd.f32 %v743, %v744
    %v746 = vadd.f32 %v730, %v732
    %v747 = vadd.f32 %v746, %v734
    %v748 = vadd.f32 %v747, %v736
    %v749 = vrot.slane %v748, 4
    %v750 = vadd.f32 %v748, %v749
    %v751 = vrot.slane %v750, 2
    %v752 = vadd.f32 %v750, %v751
    %v753 = vrot.slane %v752, 1
    %v754 = vadd.f32 %v752, %v753
    %v755 = vmul.f32 %v745, %v447
    %v756 = vmul.f32 %v754, %v447
    %v757 = vadd.f32 %v755, 1e-05
    %v758 = vadd.f32 %v756, 1e-05
    %v759 = vrsqrt.pop %v757
    %v760 = vrsqrt.pop %v758
    %v761 = vmul.f32 %v721, %v759
    %v762 = vmul.f32 %v722, %v760
    %v763 = vmul.f32 %v723, %v759
    %v764 = vmul.f32 %v724, %v760
    %v765 = vmul.f32 %v725, %v759
    %v766 = vmul.f32 %v726, %v760
    %v767 = vmul.f32 %v727, %v759
    %v768 = vmul.f32 %v728, %v760
    %s769 = scalar_lea.vmem %s5, 32
    %v770 = vld [vmem:[%s769] sm:$0xff]
    %v771 = vld [vmem:[%s769 + $0x8] sm:$0xff]
    %v772 = vld [vmem:[%s769 + $0x10] sm:$0xff]
    %v773 = vld [vmem:[%s769 + $0x18] sm:$0xff]
    %775 = vset.pattern.permute.xlu0 0
    %776 = vperm.xlu0 %775, %v770
    %v777 = vpop.permute.xlu0 %776
    %780 = vset.pattern.permute.xlu0 0
    %781 = vperm.xlu0 %780, %v771
    %v782 = vpop.permute.xlu0 %781
    %785 = vset.pattern.permute.xlu0 0
    %786 = vperm.xlu0 %785, %v772
    %v787 = vpop.permute.xlu0 %786
    %790 = vset.pattern.permute.xlu0 0
    %791 = vperm.xlu0 %790, %v773
    %v792 = vpop.permute.xlu0 %791
    %v794 = vmul.f32 %v761, %v777
    %v795 = vmul.f32 %v762, %v777
    %v796 = vmul.f32 %v763, %v782
    %v797 = vmul.f32 %v764, %v782
    %v798 = vmul.f32 %v765, %v787
    %v799 = vmul.f32 %v766, %v787
    %v800 = vmul.f32 %v767, %v792
    %v801 = vmul.f32 %v768, %v792
    %s802 = scalar_lea.vmem %s6, 32
    %v803 = vld [vmem:[%s802] sm:$0xff]
    %v804 = vld [vmem:[%s802 + $0x8] sm:$0xff]
    %v805 = vld [vmem:[%s802 + $0x10] sm:$0xff]
    %v806 = vld [vmem:[%s802 + $0x18] sm:$0xff]
    %808 = vset.pattern.permute.xlu0 0
    %809 = vperm.xlu0 %808, %v803
    %v810 = vpop.permute.xlu0 %809
    %813 = vset.pattern.permute.xlu0 0
    %814 = vperm.xlu0 %813, %v804
    %v815 = vpop.permute.xlu0 %814
    %818 = vset.pattern.permute.xlu0 0
    %819 = vperm.xlu0 %818, %v805
    %v820 = vpop.permute.xlu0 %819
    %823 = vset.pattern.permute.xlu0 0
    %824 = vperm.xlu0 %823, %v806
    %v825 = vpop.permute.xlu0 %824
    %v827 = vadd.f32 %v794, %v810
    %v828 = vadd.f32 %v795, %v810
    %v829 = vadd.f32 %v796, %v815
    %v830 = vadd.f32 %v797, %v815
    %v831 = vadd.f32 %v798, %v820
    %v832 = vadd.f32 %v799, %v820
    %v833 = vadd.f32 %v800, %v825
    %v834 = vadd.f32 %v801, %v825
    %v835 = vtanh.pop %v827
    %v836 = vtanh.pop %v828
    %v837 = vtanh.pop %v829
    %v838 = vtanh.pop %v830
    %v839 = vtanh.pop %v831
    %v840 = vtanh.pop %v832
    %v841 = vtanh.pop %v833
    %v842 = vtanh.pop %v834
    %v843 = vld [vmem:[%s7] sm:$0x7]
    %v844 = vld [vmem:[%s8] sm:$0x7]
    %846 = vset.pattern.permute.xlu0 0
    %847 = vperm.xlu0 %846, %v844
    %v848 = vpop.permute.xlu0 %847
    %v851 = vsel %vm327, %v843, 0
    %853 = vmatprep.subr.mxu0 0.0
    %854 = vmatpush1.msra.mxu0 0.0
    %855 = vmatprep.subr.mxu0 0.0
    %856 = vmatpush1.msra.mxu0 0.0
    %857 = vmatprep.subr.mxu0 0.0
    %858 = vmatpush1.msra.mxu0 0.0
    %859 = vmatprep.subr.mxu0 0.0
    %860 = vmatpush1.msra.mxu0 0.0
    %861 = vmatprep.subr.mxu0 0.0
    %862 = vmatpush1.msra.mxu0 0.0
    %863 = vmatprep.subr.mxu0 0.0
    %864 = vmatpush1.msra.mxu0 0.0
    %865 = vmatprep.subr.mxu0 0.0
    %866 = vmatpush1.msra.mxu0 0.0
    %867 = vmatprep.subr.mxu0 0.0
    %868 = vmatpush1.msra.mxu0 0.0
    %869 = vmatprep.subr.mxu0 0.0
    %870 = vmatpush1.msra.mxu0 0.0
    %871 = vmatprep.subr.mxu0 0.0
    %872 = vmatpush1.msra.mxu0 0.0
    %873 = vmatprep.subr.mxu0 0.0
    %874 = vmatpush1.msra.mxu0 0.0
    %875 = vmatprep.subr.mxu0 0.0
    %876 = vmatpush1.msra.mxu0 0.0
    %877 = vmatprep.subr.mxu0 %v842
    %878 = vmatpush1.msra.mxu0 %v841
    %879 = vmatprep.subr.mxu0 %v840
    %880 = vmatpush1.msra.mxu0 %v839
    %881 = vmatprep.subr.mxu0 %v838
    %882 = vmatpush1.msra.mxu0 %v837
    %883 = vmatprep.subr.mxu0 %v836
    %884 = vmatpush1.msra.mxu0 %v835
    %885 = vmatprep.subr.mxu0 0.0
    %886 = vmatpush2.msra.mxu0 0.0
    %887 = vmatprep.subr.mxu0 0.0
    %888 = vmatpush2.msra.mxu0 0.0
    %889 = vmatprep.subr.mxu0 0.0
    %890 = vmatpush2.msra.mxu0 0.0
    %891 = vmatprep.subr.mxu0 0.0
    %892 = vmatpush2.msra.mxu0 0.0
    %893 = vmatprep.subr.mxu0 0.0
    %894 = vmatpush2.msra.mxu0 0.0
    %895 = vmatprep.subr.mxu0 0.0
    %896 = vmatpush2.msra.mxu0 0.0
    %897 = vmatprep.subr.mxu0 0.0
    %898 = vmatpush2.msra.mxu0 0.0
    %899 = vmatprep.subr.mxu0 0.0
    %900 = vmatpush2.msra.mxu0 0.0
    %901 = vmatprep.subr.mxu0 0.0
    %902 = vmatpush2.msra.mxu0 0.0
    %903 = vmatprep.subr.mxu0 0.0
    %904 = vmatpush2.msra.mxu0 0.0
    %905 = vmatprep.subr.mxu0 0.0
    %906 = vmatpush2.msra.mxu0 0.0
    %907 = vmatprep.subr.mxu0 0.0
    %908 = vmatpush2.msra.mxu0 0.0
    %909 = vmatprep.subr.mxu0 0.0
    %910 = vmatpush2.msra.mxu0 0.0
    %911 = vmatprep.subr.mxu0 0.0
    %912 = vmatpush2.msra.mxu0 0.0
    %913 = vmatprep.subr.mxu0 0.0
    %914 = vmatpush2.msra.mxu0 0.0
    %915 = vmatprep.subr.mxu0 0.0
    %916 = vmatpush2.msra.mxu0 0.0
    %917 = vmatprep.mubr.f32.mxu0 0.0
    %918 = vmatmul.mubr.f32.gmra.mxu0 %v851
    %v919 = vpop.f32.mrf.mxu0
    %v920 = vadd.f32 %v848, %v919
    %v921 = vpop.f32.mrf.mxu0
    %v922 = vadd.f32 %v848, %v921
    %923 = vdwg.mxu0
    %v926 = vcombine.low %v920, %v922
    %928 = vst [vmem:[#allocation2] sm:$0x77] %v926
    // Predicated region
    $region38: #{tpu_custom_call.1} parent=1 // pred_check
      _
    $region39: #{tpu_custom_call.1} parent=1 // pred_check_branch
      %930 = sbr.rel (0) target = $region41
    $region40: #{tpu_custom_call.1} parent=1 // pred_region
      %s932 = ssub.s32 128, 128
      %933 = vsyncadd [#allocation3], %s932
      %s935 = sshll.u32 [#allocation2], 4
      %s936 = int_to_ptr.vmem [resolvable:$true] %s935
      %938 = dma.vmem_to_hbm [thread:$0]  %s936, 128, %s9, [#allocation3]
    $region41: #{tpu_custom_call.1} parent=1 // pred_fallthru
      _
    // Predicated region
    $region42: #{tpu_custom_call.1} parent=1 // pred_check
      _
    $region43: #{tpu_custom_call.1} parent=1 // pred_check_branch
      %940 = sbr.rel (0) target = $region45
    $region44: #{tpu_custom_call.1} parent=1 // pred_region
      %941 = dma.done [#allocation3], 128
    $region45: #{tpu_custom_call.1} parent=1 // pred_fallthru
      _
    %942 = vsyncpa [#allocation3], 1

</llo_original>
